<compile_context>
chip_gen: v7x
topology: tpu7x:2x2x1
jax: 0.10.0
libtpu: 0.0.40
codegen_flags: <defaults>
</compile_context>

<pallas_src>
import functools

import jax
import jax.numpy as jnp
from jax import lax
from jax.experimental import pallas as pl
from jax.experimental.pallas import tpu as pltpu


def _round_up(x, m):
    return (x + m - 1) // m * m


def _vmem_budget_bytes():
    """Per-generation VMEM budget for the double-buffered x/y blocks."""
    cap = None
    try:
        cap = int(pltpu.get_tpu_info().vmem_capacity_bytes)
    except Exception:
        cap = None
    if cap is None:
        return 48 << 20                 # unknown chip: safe everywhere (incl. v7x)
    if cap <= (64 << 20):               # v7x-class: 64 MiB physical per TensorCore
        return 44 << 20
    return 96 << 20                     # v5e / v6e: 128 MiB physical


def _num_tensorcores():
    try:
        info = pltpu.get_tpu_info()
        for name in ("num_cores", "core_count", "num_tensorcores",
                     "tensorcores_per_chip", "cores_per_chip"):
            v = getattr(info, name, None)
            if v:
                return int(v)
    except Exception:
        pass
    try:
        v = getattr(jax.devices()[0], "num_cores", None)
        if v:
            return int(v)
    except Exception:
        pass
    return 1


# ------------------------------ Pallas kernel -------------------------------

def _fed_bn_kernel(tracked_ref,                                    # SMEM (1,) int32 (scalar prefetch)
                   x_ref, pm_ref, pv_ref, rm_ref, rv_ref, w_ref, b_ref,  # inputs  (VMEM)
                   y_ref, rm_out, rv_out, pm_out, pv_out,                # outputs (VMEM)
                   *, momentum, eps, num_workers, batch, tile_rows,
                   ragged_rows, affine):
    bi = pl.program_id(1)               # batch-tile index (reduction / "arbitrary" axis)
    nbt = pl.num_programs(1)

    # ---- per-feature-tile init: federated running-stat update + zero accumulators ----
    @pl.when(bi == 0)
    def _init():
        rm_old = rm_ref[...]            # (1, TC)
        rv_old = rv_ref[...]
        rm_upd = (1.0 - momentum) * rm_old + momentum * pm_ref[...]
        # TODO(synk): nb_data == 0 when num_workers*N == 1 divides by zero, exactly as
        # in the PyTorch reference; not guarded here.
        nbd = float(num_workers * batch - 1)
        c_var = (num_workers / nbd) * pv_ref[...] \
            - ((nbd + 1.0) / nbd) * (rm_upd * rm_upd)
        rv_upd = (1.0 - momentum) * rv_old + momentum * c_var
        # Gate on num_batches_tracked > 0 with an exact {0,1} blend (all operands finite).
        flag = (tracked_ref[0] > 0).astype(jnp.float32)
        rm_out[...] = flag * rm_upd + (1.0 - flag) * rm_old
        rv_out[...] = flag * rv_upd + (1.0 - flag) * rv_old
        pm_out[...] = jnp.zeros_like(pm_out)     # batch-sum accumulators
        pv_out[...] = jnp.zeros_like(pv_out)

    # ---- current batch tile ----
    x = x_ref[...].astype(jnp.float32)           # (TN, TC)

    if ragged_rows:
        rows = lax.broadcasted_iota(jnp.int32, (x.shape[0], 1), 0) + bi * tile_rows
        valid = rows < batch
        xs = jnp.where(valid, x, 0.0)            # keep garbage rows out of the sums
    else:
        xs = x

    pm_out[...] += jnp.sum(xs, axis=0, keepdims=True)
    pv_out[...] += jnp.sum(xs * xs, axis=0, keepdims=True)

    # ---- normalization (+ affine); rm_out/rv_out are resident across the batch axis ----
    inv_std = lax.rsqrt(rv_out[...] + eps)
    y = (x - rm_out[...]) * inv_std
    if affine:
        y = y * w_ref[...] + b_ref[...]
    y_ref[...] = y.astype(y_ref.dtype)

    # ---- finalize: sum -> mean ----
    @pl.when(bi == nbt - 1)
    def _fin():
        pm_out[...] = pm_out[...] * (1.0 / batch)


# ------------------------------- wrapper -------------------------------------

def fed_batch_norm1d_forward(x, state, *, num_workers, momentum=0.1, eps=1e-5,
                             affine=True, tile_rows=None, tile_cols=None,
                             vmem_budget_bytes=None):
    """One FedBatchNorm1d.forward step. Returns (y, new_state)."""
    N, C = x.shape
    f32 = jnp.float32
    out_dtype = x.dtype

    budget = int(vmem_budget_bytes or _vmem_budget_bytes())
    # Double-buffered x + y blocks: bytes per (row, feature) element.
    per_elem = 2 * (x.dtype.itemsize + jnp.dtype(out_dtype).itemsize)

    # ---- feature tiling: prefer TC == C (contiguous row DMAs) ----
    if tile_cols is not None:
        TC = int(tile_cols)
    else:
        TC = C
        n_cores = _num_tensorcores()
        if n_cores >= 2 and C >= 256:
            # keep >= n_cores feature tiles so the "parallel" axis shards across cores
            TC = max(128, _round_up(pl.cdiv(C, n_cores), 128))

    # ---- batch tiling: largest multiple-of-8 row block that fits the VMEM budget ----
    if tile_rows is not None:
        TN = int(tile_rows)
    else:
        max_rows = max(budget // (per_elem * max(TC, 1)), 1)
        if max_rows >= N:
            TN = N
        elif max_rows >= 8:
            TN = int(max_rows // 8 * 8)
        else:
            # feature dim too wide for even an 8-row strip: tile features instead
            TN = 8 if N > 8 else N
            if tile_cols is None:
                TC = max(128, int((budget // (per_elem * max(TN, 1))) // 128 * 128))

    grid_f = pl.cdiv(C, TC)
    grid_b = pl.cdiv(N, TN)
    ragged_rows = (grid_b * TN) != N

    # ---- small (1, C) state / parameter vectors (no activation padding anywhere) ----
    def vec(v):
        return jnp.asarray(v, f32).reshape(1, C)

    pm = vec(state["previous_batch_mean"])
    pv = vec(state["previous_batch_var"])
    rm = vec(state["running_mean"])
    rv = vec(state["running_var"])
    if affine:
        w = vec(state["weight"])
        b = vec(state["bias"])
    else:
        w = jnp.ones((1, C), f32)
        b = jnp.zeros((1, C), f32)
    tracked = jnp.asarray(state["num_batches_tracked"], jnp.int32).reshape(1)

    kern = functools.partial(
        _fed_bn_kernel,
        momentum=float(momentum), eps=float(eps),
        num_workers=int(num_workers), batch=int(N),
        tile_rows=int(TN), ragged_rows=bool(ragged_rows), affine=bool(affine))

    vec_shape = jax.ShapeDtypeStruct((1, C), f32)
    out_shapes = (jax.ShapeDtypeStruct((N, C), out_dtype),
                  vec_shape, vec_shape, vec_shape, vec_shape)

    # index_maps receive the scalar-prefetch ref as a trailing positional arg.
    row_spec = pl.BlockSpec((TN, TC), lambda f, bi, t: (bi, f))
    vin_spec = pl.BlockSpec((1, TC), lambda f, bi, t: (0, f))
    vout_spec = pl.BlockSpec((1, TC), lambda f, bi, t: (0, f))   # resident across batch axis

    xb = x.dtype.itemsize
    yb = jnp.dtype(out_dtype).itemsize
    cost = pl.CostEstimate(
        flops=int(8 * N * C + 24 * C),
        transcendentals=int(C),
        bytes_accessed=int(N * C * (xb + yb) + 10 * C * 4),
    )

    vmem_limit = int(min(budget + (8 << 20), 100 << 20))

    y, rm_new, rv_new, pm_new, pv_new = pl.pallas_call(
        kern,
        out_shape=out_shapes,
        grid_spec=pltpu.PrefetchScalarGridSpec(
            num_scalar_prefetch=1,
            grid=(grid_f, grid_b),
            in_specs=[row_spec, vin_spec, vin_spec, vin_spec, vin_spec,
                      vin_spec, vin_spec],
            out_specs=[row_spec, vout_spec, vout_spec, vout_spec, vout_spec],
        ),
        compiler_params=pltpu.CompilerParams(
            dimension_semantics=("parallel", "arbitrary"),
            vmem_limit_bytes=vmem_limit),
        cost_estimate=cost,
    )(tracked, x, pm, pv, rm, rv, w, b)

    new_state = dict(state)
    new_state["running_mean"] = rm_new.reshape(C)
    new_state["running_var"] = rv_new.reshape(C)
    new_state["previous_batch_mean"] = pm_new.reshape(C)
    new_state["previous_batch_var"] = pv_new.reshape(C)
    new_state["num_batches_tracked"] = (
        jnp.asarray(state["num_batches_tracked"], jnp.int32) + 1)
    return y, new_state


# --------------------------- pure-JAX reference ------------------------------

def reference_forward(x, state, *, num_workers, momentum=0.1, eps=1e-5, affine=True):
    x = jnp.asarray(x, jnp.float32)
    N = x.shape[0]
    rm = jnp.asarray(state["running_mean"], jnp.float32)
    rv = jnp.asarray(state["running_var"], jnp.float32)
    if int(state["num_batches_tracked"]) > 0:
        rm = (1.0 - momentum) * rm + momentum * state["previous_batch_mean"]
        nb = num_workers * N - 1
        c_var = (num_workers / nb) * state["previous_batch_var"] \
            - ((nb + 1) / nb) * rm ** 2
        rv = (1.0 - momentum) * rv + momentum * c_var
    new_pm = x.mean(axis=0)
    new_pv = (x ** 2).sum(axis=0)
    y = (x - rm) / jnp.sqrt(rv + eps)
    if affine:
        y = y * state["weight"] + state["bias"]
    new_state = dict(state, running_mean=rm, running_var=rv,
                     previous_batch_mean=new_pm, previous_batch_var=new_pv,
                     num_batches_tracked=state["num_batches_tracked"] + 1)
    return y, new_state


# ---------------------------------- main -------------------------------------

def _check(got, want, rtol=2e-4, atol=2e-4):
    err = float(jnp.max(jnp.abs(jnp.asarray(got) - jnp.asarray(want))))
    assert jnp.allclose(got, want, rtol=rtol, atol=atol), err


def _fresh_state(key, num_features):
    k1, k2 = jax.random.split(key)
    return {
        "previous_batch_mean": jnp.zeros((num_features,), jnp.float32),
        "previous_batch_var": jnp.zeros((num_features,), jnp.float32),
        "running_mean": jnp.zeros((num_features,), jnp.float32),
        "running_var": jnp.ones((num_features,), jnp.float32),
        "weight": jax.random.uniform(k1, (num_features,), jnp.float32, 0.5, 1.5),
        "bias": 0.1 * jax.random.normal(k2, (num_features,), jnp.float32),
        "num_batches_tracked": jnp.array(0, jnp.int32),
    }
    # TODO(synk): self.b = nn.BatchNorm2d(2) in __init__ is never used in forward; omitted.


if __name__ == "__main__":
    key = jax.random.PRNGKey(0)
    ks = jax.random.split(key, 8)

    # ---------------- test 1: module-default small shape (8 x 32) ----------------
    num_features, batch, num_workers = 32, 8, 4
    state = _fresh_state(ks[0], num_features)
    x1 = jax.random.normal(ks[1], (batch, num_features), jnp.float32)
    x2 = 2.0 * jax.random.normal(ks[2], (batch, num_features), jnp.float32) + 0.5

    y1, st1 = fed_batch_norm1d_forward(x1, state, num_workers=num_workers)
    y2, st2 = fed_batch_norm1d_forward(x2, st1, num_workers=num_workers)
    y2 = jax.block_until_ready(y2)

    r1, rst1 = reference_forward(x1, state, num_workers=num_workers)
    r2, rst2 = reference_forward(x2, rst1, num_workers=num_workers)

    assert y1.shape == (batch, num_features) and y1.dtype == jnp.float32
    for got, want in [(y1, r1), (y2, r2),
                      (st2["running_mean"], rst2["running_mean"]),
                      (st2["running_var"], rst2["running_var"]),
                      (st2["previous_batch_mean"], rst2["previous_batch_mean"]),
                      (st2["previous_batch_var"], rst2["previous_batch_var"])]:
        _check(got, want)
    assert int(st2["num_batches_tracked"]) == 2

    # -------- test 2: forced small tiles -> ragged feature + ragged batch tiles --------
    N2, C2, nw2 = 40, 200, 3
    state2 = _fresh_state(ks[3], C2)
    x3 = jax.random.normal(ks[4], (N2, C2), jnp.float32)
    x4 = 1.5 * jax.random.normal(ks[5], (N2, C2), jnp.float32) - 0.3

    y3, s3 = fed_batch_norm1d_forward(x3, state2, num_workers=nw2,
                                      tile_rows=16, tile_cols=128)
    y4, s4 = fed_batch_norm1d_forward(x4, s3, num_workers=nw2,
                                      tile_rows=16, tile_cols=128)
    y4 = jax.block_until_ready(y4)

    q3, qs3 = reference_forward(x3, state2, num_workers=nw2)
    q4, qs4 = reference_forward(x4, qs3, num_workers=nw2)

    for got, want in [(y3, q3), (y4, q4),
                      (s4["running_mean"], qs4["running_mean"]),
                      (s4["running_var"], qs4["running_var"]),
                      (s4["previous_batch_mean"], qs4["previous_batch_mean"]),
                      (s4["previous_batch_var"], qs4["previous_batch_var"])]:
        _check(got, want)
    assert int(s4["num_batches_tracked"]) == 2

    print("KERNEL_OK")
</pallas_src>

<mosaic_0001>
module attributes {stable_mosaic.version = 11 : i64} {
  func.func @_fed_bn_kernel(%arg0: i32, %arg1: i32, %arg2: memref<1xi32, #tpu.memory_space<smem>>, %arg3: memref<8x32xf32, #tpu.memory_space<vmem>>, %arg4: memref<1x32xf32, #tpu.memory_space<vmem>>, %arg5: memref<1x32xf32, #tpu.memory_space<vmem>>, %arg6: memref<1x32xf32, #tpu.memory_space<vmem>>, %arg7: memref<1x32xf32, #tpu.memory_space<vmem>>, %arg8: memref<1x32xf32, #tpu.memory_space<vmem>>, %arg9: memref<1x32xf32, #tpu.memory_space<vmem>>, %arg10: memref<8x32xf32, #tpu.memory_space<vmem>>, %arg11: memref<1x32xf32, #tpu.memory_space<vmem>>, %arg12: memref<1x32xf32, #tpu.memory_space<vmem>>, %arg13: memref<1x32xf32, #tpu.memory_space<vmem>>, %arg14: memref<1x32xf32, #tpu.memory_space<vmem>>) attributes {dimension_semantics = [#tpu.dimension_semantics<parallel>, #tpu.dimension_semantics<arbitrary>], iteration_bounds = array<i64: 1, 1>, scalar_prefetch = 1 : i64, scratch_operands = 0 : i64, tpu.core_type = #tpu.core_type<tc>, window_params = [{transform_indices = @transform_0, window_bounds = array<i64: 8, 32>}, {transform_indices = @transform_1, window_bounds = array<i64: 1, 32>}, {transform_indices = @transform_2, window_bounds = array<i64: 1, 32>}, {transform_indices = @transform_3, window_bounds = array<i64: 1, 32>}, {transform_indices = @transform_4, window_bounds = array<i64: 1, 32>}, {transform_indices = @transform_5, window_bounds = array<i64: 1, 32>}, {transform_indices = @transform_6, window_bounds = array<i64: 1, 32>}, {transform_indices = @transform_7, window_bounds = array<i64: 8, 32>}, {transform_indices = @transform_8, window_bounds = array<i64: 1, 32>}, {transform_indices = @transform_9, window_bounds = array<i64: 1, 32>}, {transform_indices = @transform_10, window_bounds = array<i64: 1, 32>}, {transform_indices = @transform_11, window_bounds = array<i64: 1, 32>}]} {
    %c0_i32 = arith.constant 0 : i32
    %0 = arith.cmpi eq, %arg1, %c0_i32 : i32
    %1 = arith.extui %0 : i1 to i32
    %c0_i32_0 = arith.constant 0 : i32
    %2 = arith.cmpi ne, %1, %c0_i32_0 : i32
    scf.if %2 {
      %c0_24 = arith.constant 0 : index
      %c0_25 = arith.constant 0 : index
      %34 = vector.load %arg6[%c0_24, %c0_25] : memref<1x32xf32, #tpu.memory_space<vmem>>, vector<1x32xf32>
      %c0_26 = arith.constant 0 : index
      %c0_27 = arith.constant 0 : index
      %35 = vector.load %arg7[%c0_26, %c0_27] : memref<1x32xf32, #tpu.memory_space<vmem>>, vector<1x32xf32>
      %cst_28 = arith.constant 0.899999976 : f32
      %36 = vector.broadcast %cst_28 : f32 to vector<1x32xf32>
      %37 = arith.mulf %36, %34 : vector<1x32xf32>
      %c0_29 = arith.constant 0 : index
      %c0_30 = arith.constant 0 : index
      %38 = vector.load %arg4[%c0_29, %c0_30] : memref<1x32xf32, #tpu.memory_space<vmem>>, vector<1x32xf32>
      %cst_31 = arith.constant 1.000000e-01 : f32
      %39 = vector.broadcast %cst_31 : f32 to vector<1x32xf32>
      %40 = arith.mulf %39, %38 : vector<1x32xf32>
      %41 = arith.addf %37, %40 : vector<1x32xf32>
      %c0_32 = arith.constant 0 : index
      %c0_33 = arith.constant 0 : index
      %42 = vector.load %arg5[%c0_32, %c0_33] : memref<1x32xf32, #tpu.memory_space<vmem>>, vector<1x32xf32>
      %cst_34 = arith.constant 0.129032254 : f32
      %43 = vector.broadcast %cst_34 : f32 to vector<1x32xf32>
      %44 = arith.mulf %43, %42 : vector<1x32xf32>
      %45 = arith.mulf %41, %41 : vector<1x32xf32>
      %cst_35 = arith.constant 1.03225803 : f32
      %46 = vector.broadcast %cst_35 : f32 to vector<1x32xf32>
      %47 = arith.mulf %46, %45 : vector<1x32xf32>
      %48 = arith.subf %44, %47 : vector<1x32xf32>
      %cst_36 = arith.constant 0.899999976 : f32
      %49 = vector.broadcast %cst_36 : f32 to vector<1x32xf32>
      %50 = arith.mulf %49, %35 : vector<1x32xf32>
      %cst_37 = arith.constant 1.000000e-01 : f32
      %51 = vector.broadcast %cst_37 : f32 to vector<1x32xf32>
      %52 = arith.mulf %51, %48 : vector<1x32xf32>
      %53 = arith.addf %50, %52 : vector<1x32xf32>
      %c0_38 = arith.constant 0 : index
      %54 = memref.load %arg2[%c0_38] : memref<1xi32, #tpu.memory_space<smem>>
      %c0_i32_39 = arith.constant 0 : i32
      %55 = arith.cmpi sgt, %54, %c0_i32_39 : i32
      %56 = arith.extui %55 : i1 to i32
      %57 = arith.sitofp %56 : i32 to f32
      %58 = vector.broadcast %57 : f32 to vector<1x32xf32>
      %59 = arith.mulf %58, %41 : vector<1x32xf32>
      %cst_40 = arith.constant 1.000000e+00 : f32
      %60 = arith.subf %cst_40, %57 : f32
      %61 = vector.broadcast %60 : f32 to vector<1x32xf32>
      %62 = arith.mulf %61, %34 : vector<1x32xf32>
      %63 = arith.addf %59, %62 : vector<1x32xf32>
      %c0_41 = arith.constant 0 : index
      %c0_42 = arith.constant 0 : index
      %64 = vector.load %arg11[%c0_41, %c0_42] : memref<1x32xf32, #tpu.memory_space<vmem>>, vector<1x32xf32>
      tpu.vector_store %arg11[%c0_41, %c0_42], %63 {strides = array<i32>} : memref<1x32xf32, #tpu.memory_space<vmem>>, vector<1x32xf32>,
      %65 = vector.broadcast %57 : f32 to vector<1x32xf32>
      %66 = arith.mulf %65, %53 : vector<1x32xf32>
      %cst_43 = arith.constant 1.000000e+00 : f32
      %67 = arith.subf %cst_43, %57 : f32
      %68 = vector.broadcast %67 : f32 to vector<1x32xf32>
      %69 = arith.mulf %68, %35 : vector<1x32xf32>
      %70 = arith.addf %66, %69 : vector<1x32xf32>
      %c0_44 = arith.constant 0 : index
      %c0_45 = arith.constant 0 : index
      %71 = vector.load %arg12[%c0_44, %c0_45] : memref<1x32xf32, #tpu.memory_space<vmem>>, vector<1x32xf32>
      tpu.vector_store %arg12[%c0_44, %c0_45], %70 {strides = array<i32>} : memref<1x32xf32, #tpu.memory_space<vmem>>, vector<1x32xf32>,
      %cst_46 = arith.constant 0.000000e+00 : f32
      %72 = vector.broadcast %cst_46 : f32 to vector<1x32xf32>
      %c0_47 = arith.constant 0 : index
      %c0_48 = arith.constant 0 : index
      %73 = vector.load %arg13[%c0_47, %c0_48] : memref<1x32xf32, #tpu.memory_space<vmem>>, vector<1x32xf32>
      tpu.vector_store %arg13[%c0_47, %c0_48], %72 {strides = array<i32>} : memref<1x32xf32, #tpu.memory_space<vmem>>, vector<1x32xf32>,
      %cst_49 = arith.constant 0.000000e+00 : f32
      %74 = vector.broadcast %cst_49 : f32 to vector<1x32xf32>
      %c0_50 = arith.constant 0 : index
      %c0_51 = arith.constant 0 : index
      %75 = vector.load %arg14[%c0_50, %c0_51] : memref<1x32xf32, #tpu.memory_space<vmem>>, vector<1x32xf32>
      tpu.vector_store %arg14[%c0_50, %c0_51], %74 {strides = array<i32>} : memref<1x32xf32, #tpu.memory_space<vmem>>, vector<1x32xf32>,
    } else {
    }
    %c0 = arith.constant 0 : index
    %c0_1 = arith.constant 0 : index
    %3 = vector.load %arg3[%c0, %c0_1] : memref<8x32xf32, #tpu.memory_space<vmem>>, vector<8x32xf32>
    %c0_2 = arith.constant 0 : index
    %c0_3 = arith.constant 0 : index
    %4 = vector.load %arg13[%c0_2, %c0_3] : memref<1x32xf32, #tpu.memory_space<vmem>>, vector<1x32xf32>
    %cst = arith.constant dense<0.000000e+00> : vector<32xf32>
    %5 = vector.multi_reduction <add>, %3, %cst [0] : vector<8x32xf32> to vector<32xf32>
    %6 = vector.shape_cast %5 : vector<32xf32> to vector<1x32xf32>
    %7 = arith.addf %4, %6 : vector<1x32xf32>
    %c0_4 = arith.constant 0 : index
    %c0_5 = arith.constant 0 : index
    %8 = vector.load %arg13[%c0_4, %c0_5] : memref<1x32xf32, #tpu.memory_space<vmem>>, vector<1x32xf32>
    tpu.vector_store %arg13[%c0_4, %c0_5], %7 {strides = array<i32>} : memref<1x32xf32, #tpu.memory_space<vmem>>, vector<1x32xf32>,
    %c0_6 = arith.constant 0 : index
    %c0_7 = arith.constant 0 : index
    %9 = vector.load %arg14[%c0_6, %c0_7] : memref<1x32xf32, #tpu.memory_space<vmem>>, vector<1x32xf32>
    %10 = arith.mulf %3, %3 : vector<8x32xf32>
    %cst_8 = arith.constant dense<0.000000e+00> : vector<32xf32>
    %11 = vector.multi_reduction <add>, %10, %cst_8 [0] : vector<8x32xf32> to vector<32xf32>
    %12 = vector.shape_cast %11 : vector<32xf32> to vector<1x32xf32>
    %13 = arith.addf %9, %12 : vector<1x32xf32>
    %c0_9 = arith.constant 0 : index
    %c0_10 = arith.constant 0 : index
    %14 = vector.load %arg14[%c0_9, %c0_10] : memref<1x32xf32, #tpu.memory_space<vmem>>, vector<1x32xf32>
    tpu.vector_store %arg14[%c0_9, %c0_10], %13 {strides = array<i32>} : memref<1x32xf32, #tpu.memory_space<vmem>>, vector<1x32xf32>,
    %c0_11 = arith.constant 0 : index
    %c0_12 = arith.constant 0 : index
    %15 = vector.load %arg12[%c0_11, %c0_12] : memref<1x32xf32, #tpu.memory_space<vmem>>, vector<1x32xf32>
    %cst_13 = arith.constant 9.99999974E-6 : f32
    %16 = vector.broadcast %cst_13 : f32 to vector<1x32xf32>
    %17 = arith.addf %15, %16 : vector<1x32xf32>
    %18 = math.rsqrt %17 : vector<1x32xf32>
    %c0_14 = arith.constant 0 : index
    %c0_15 = arith.constant 0 : index
    %19 = vector.load %arg11[%c0_14, %c0_15] : memref<1x32xf32, #tpu.memory_space<vmem>>, vector<1x32xf32>
    %20 = vector.broadcast %19 : vector<1x32xf32> to vector<8x32xf32>
    %21 = arith.subf %3, %20 : vector<8x32xf32>
    %22 = vector.broadcast %18 : vector<1x32xf32> to vector<8x32xf32>
    %23 = arith.mulf %21, %22 : vector<8x32xf32>
    %c0_16 = arith.constant 0 : index
    %c0_17 = arith.constant 0 : index
    %24 = vector.load %arg8[%c0_16, %c0_17] : memref<1x32xf32, #tpu.memory_space<vmem>>, vector<1x32xf32>
    %25 = vector.broadcast %24 : vector<1x32xf32> to vector<8x32xf32>
    %26 = arith.mulf %23, %25 : vector<8x32xf32>
    %c0_18 = arith.constant 0 : index
    %c0_19 = arith.constant 0 : index
    %27 = vector.load %arg9[%c0_18, %c0_19] : memref<1x32xf32, #tpu.memory_space<vmem>>, vector<1x32xf32>
    %28 = vector.broadcast %27 : vector<1x32xf32> to vector<8x32xf32>
    %29 = arith.addf %26, %28 : vector<8x32xf32>
    %c0_20 = arith.constant 0 : index
    %c0_21 = arith.constant 0 : index
    %30 = vector.load %arg10[%c0_20, %c0_21] : memref<8x32xf32, #tpu.memory_space<vmem>>, vector<8x32xf32>
    tpu.vector_store %arg10[%c0_20, %c0_21], %29 {strides = array<i32>} : memref<8x32xf32, #tpu.memory_space<vmem>>, vector<8x32xf32>,
    %c0_i32_22 = arith.constant 0 : i32
    %31 = arith.cmpi eq, %arg1, %c0_i32_22 : i32
    %32 = arith.extui %31 : i1 to i32
    %c0_i32_23 = arith.constant 0 : i32
    %33 = arith.cmpi ne, %32, %c0_i32_23 : i32
    scf.if %33 {
      %c0_24 = arith.constant 0 : index
      %c0_25 = arith.constant 0 : index
      %34 = vector.load %arg13[%c0_24, %c0_25] : memref<1x32xf32, #tpu.memory_space<vmem>>, vector<1x32xf32>
      %cst_26 = arith.constant 1.250000e-01 : f32
      %35 = vector.broadcast %cst_26 : f32 to vector<1x32xf32>
      %36 = arith.mulf %34, %35 : vector<1x32xf32>
      %c0_27 = arith.constant 0 : index
      %c0_28 = arith.constant 0 : index
      %37 = vector.load %arg13[%c0_27, %c0_28] : memref<1x32xf32, #tpu.memory_space<vmem>>, vector<1x32xf32>
      tpu.vector_store %arg13[%c0_27, %c0_28], %36 {strides = array<i32>} : memref<1x32xf32, #tpu.memory_space<vmem>>, vector<1x32xf32>,
    } else {
    }
    return
  }
  func.func @transform_0(%arg0: i32, %arg1: i32, %arg2: memref<1xi32, #tpu.memory_space<smem>>) -> (i32, i32) {
    %c0_i32 = arith.constant 0 : i32
    return %arg1, %arg0 : i32, i32
  }
  func.func @transform_1(%arg0: i32, %arg1: i32, %arg2: memref<1xi32, #tpu.memory_space<smem>>) -> (i32, i32) {
    %c0_i32 = arith.constant 0 : i32
    %c0_i32_0 = arith.constant 0 : i32
    return %c0_i32, %arg0 : i32, i32
  }
  func.func @transform_2(%arg0: i32, %arg1: i32, %arg2: memref<1xi32, #tpu.memory_space<smem>>) -> (i32, i32) {
    %c0_i32 = arith.constant 0 : i32
    %c0_i32_0 = arith.constant 0 : i32
    return %c0_i32, %arg0 : i32, i32
  }
  func.func @transform_3(%arg0: i32, %arg1: i32, %arg2: memref<1xi32, #tpu.memory_space<smem>>) -> (i32, i32) {
    %c0_i32 = arith.constant 0 : i32
    %c0_i32_0 = arith.constant 0 : i32
    return %c0_i32, %arg0 : i32, i32
  }
  func.func @transform_4(%arg0: i32, %arg1: i32, %arg2: memref<1xi32, #tpu.memory_space<smem>>) -> (i32, i32) {
    %c0_i32 = arith.constant 0 : i32
    %c0_i32_0 = arith.constant 0 : i32
    return %c0_i32, %arg0 : i32, i32
  }
  func.func @transform_5(%arg0: i32, %arg1: i32, %arg2: memref<1xi32, #tpu.memory_space<smem>>) -> (i32, i32) {
    %c0_i32 = arith.constant 0 : i32
    %c0_i32_0 = arith.constant 0 : i32
    return %c0_i32, %arg0 : i32, i32
  }
  func.func @transform_6(%arg0: i32, %arg1: i32, %arg2: memref<1xi32, #tpu.memory_space<smem>>) -> (i32, i32) {
    %c0_i32 = arith.constant 0 : i32
    %c0_i32_0 = arith.constant 0 : i32
    return %c0_i32, %arg0 : i32, i32
  }
  func.func @transform_7(%arg0: i32, %arg1: i32, %arg2: memref<1xi32, #tpu.memory_space<smem>>) -> (i32, i32) {
    %c0_i32 = arith.constant 0 : i32
    return %arg1, %arg0 : i32, i32
  }
  func.func @transform_8(%arg0: i32, %arg1: i32, %arg2: memref<1xi32, #tpu.memory_space<smem>>) -> (i32, i32) {
    %c0_i32 = arith.constant 0 : i32
    %c0_i32_0 = arith.constant 0 : i32
    return %c0_i32, %arg0 : i32, i32
  }
  func.func @transform_9(%arg0: i32, %arg1: i32, %arg2: memref<1xi32, #tpu.memory_space<smem>>) -> (i32, i32) {
    %c0_i32 = arith.constant 0 : i32
    %c0_i32_0 = arith.constant 0 : i32
    return %c0_i32, %arg0 : i32, i32
  }
  func.func @transform_10(%arg0: i32, %arg1: i32, %arg2: memref<1xi32, #tpu.memory_space<smem>>) -> (i32, i32) {
    %c0_i32 = arith.constant 0 : i32
    %c0_i32_0 = arith.constant 0 : i32
    return %c0_i32, %arg0 : i32, i32
  }
  func.func @transform_11(%arg0: i32, %arg1: i32, %arg2: memref<1xi32, #tpu.memory_space<smem>>) -> (i32, i32) {
    %c0_i32 = arith.constant 0 : i32
    %c0_i32_0 = arith.constant 0 : i32
    return %c0_i32, %arg0 : i32, i32
  }
}

</mosaic_0001>

<llo_original>
// kernel: tpu_custom_call.1
$region0: #{tpu_custom_call.1}
  #allocation0 [shape = 'u32[]', space=smem, size = 0x4, offset = 0x4, fixed_abs, tag = 'smem constant byte address 0x4 - core index']
  #allocation1 [shape = 'u32[144,128]{1,0:T(1,128)}', space=vmem, size = 0x12000, scoped, tag = 'internal scratch']
  #allocation2 [shape = 's32[1]{0}', space=sflag, size = 0x4, scoped, tag = 'scoped memory for tpu_custom_call.1']
  #allocation3 [shape = 's32[1]{0:T(128)S(6)}', space=smem, size = 0x200, scoped, tag = 'prefetched SMEM operand 0']
  %s0 = inlined_call_operand.<no memory space> [shape: s32[1], index: 0, kind: input, shape index: {}]
  %s1 = inlined_call_operand.hbm [shape: f32[8,32], index: 1, kind: input, shape index: {}]
  %s2 = inlined_call_operand.vmem [shape: f32[1,32], index: 2, kind: input, shape index: {}]
  %s3 = inlined_call_operand.vmem [shape: f32[1,32], index: 3, kind: input, shape index: {}]
  %s4 = inlined_call_operand.vmem [shape: f32[1,32], index: 4, kind: input, shape index: {}]
  %s5 = inlined_call_operand.vmem [shape: f32[1,32], index: 5, kind: input, shape index: {}]
  %s6 = inlined_call_operand.vmem [shape: f32[1,32], index: 6, kind: input, shape index: {}]
  %s7 = inlined_call_operand.vmem [shape: f32[1,32], index: 7, kind: input, shape index: {}]
  %s8 = inlined_call_operand.hbm [shape: f32[8,32], index: 8, kind: output, shape index: {0}]
  %s9 = inlined_call_operand.hbm [shape: f32[1,32], index: 9, kind: output, shape index: {1}]
  %s10 = inlined_call_operand.hbm [shape: f32[1,32], index: 10, kind: output, shape index: {2}]
  %s11 = inlined_call_operand.hbm [shape: f32[1,32], index: 11, kind: output, shape index: {3}]
  %s12 = inlined_call_operand.hbm [shape: f32[1,32], index: 12, kind: output, shape index: {4}]
  %13 = xla_tuple %s8, %s9, %s10, %s11, %s12
  %s14 = sld [smem:[#allocation0]]
  $region82: #{tpu_custom_call.1} parent=0
    _
  %s16 = ssub.s32 1, %s14
  %s17 = scalar_select 0, %s16, %s14
  %18 = sst [smem:[#allocation3]] %s0
  $region1: #{tpu_custom_call.1} parent=0
    #allocation4 [shape = 'u8[4096]{0}', space=vmem, size = 0x1000, scoped, tag = 'input window, operand 1, single buffered']
    #allocation5 [shape = 's32[1]{0}', space=sflag, size = 0x4, scoped, tag = 'scoped memory for tpu_custom_call.1']
    #allocation6 [shape = 's32[1]{0}', space=sflag, size = 0x4, scoped, tag = 'scoped memory for tpu_custom_call.1']
    #allocation7 [shape = 'u8[4096]{0}', space=vmem, size = 0x1000, scoped, tag = 'output window, operand 0, single buffered']
    #allocation8 [shape = 'u8[512]{0}', space=vmem, size = 0x400, scoped, tag = 'output window, operand 1, single buffered']
    #allocation9 [shape = 's32[1]{0}', space=sflag, size = 0x4, scoped, tag = 'scoped memory for tpu_custom_call.1']
    #allocation10 [shape = 'u8[512]{0}', space=vmem, size = 0x400, scoped, tag = 'output window, operand 2, single buffered']
    #allocation11 [shape = 'u8[512]{0}', space=vmem, size = 0x400, scoped, tag = 'output window, operand 3, single buffered']
    #allocation12 [shape = 's32[1]{0}', space=sflag, size = 0x4, scoped, tag = 'scoped memory for tpu_custom_call.1']
    #allocation13 [shape = 'u8[512]{0}', space=vmem, size = 0x400, scoped, tag = 'output window, operand 4, single buffered']
    %19 = vsyncpa [#allocation5], 0
    %20 = vsyncpa [#allocation6], 0
    %21 = vsyncpa [#allocation9], 0
    %22 = vsyncpa [#allocation12], 0
    // Predicated region
    $region2: #{tpu_custom_call.1} parent=1 // pred_check
      _
    $region3: #{tpu_custom_call.1} parent=1 // pred_check_branch
      %24 = sbr.rel (0) target = $region5
    $region4: #{tpu_custom_call.1} parent=1 // pred_region
      %s26 = ssub.s32 128, 128
      %27 = vsyncadd [#allocation5], %s26
      %s29 = sshll.u32 [#allocation4], 4
      %s30 = int_to_ptr.vmem [resolvable:$true] %s29
      %32 = dma.hbm_to_vmem [thread:$0]  %s1, 128, %s30, [#allocation5]
    $region5: #{tpu_custom_call.1} parent=1 // pred_fallthru
      _
    // Predicated region
    $region6: #{tpu_custom_call.1} parent=1 // pred_check
      _
    $region7: #{tpu_custom_call.1} parent=1 // pred_check_branch
      %34 = sbr.rel (0) target = $region9
    $region8: #{tpu_custom_call.1} parent=1 // pred_region
      _
    $region9: #{tpu_custom_call.1} parent=1 // pred_fallthru
      _
    // Predicated region
    $region10: #{tpu_custom_call.1} parent=1 // pred_check
      _
    $region11: #{tpu_custom_call.1} parent=1 // pred_check_branch
      %36 = sbr.rel (0) target = $region13
    $region12: #{tpu_custom_call.1} parent=1 // pred_region
      _
    $region13: #{tpu_custom_call.1} parent=1 // pred_fallthru
      _
    // Predicated region
    $region14: #{tpu_custom_call.1} parent=1 // pred_check
      _
    $region15: #{tpu_custom_call.1} parent=1 // pred_check_branch
      %38 = sbr.rel (0) target = $region17
    $region16: #{tpu_custom_call.1} parent=1 // pred_region
      _
    $region17: #{tpu_custom_call.1} parent=1 // pred_fallthru
      _
    // Predicated region
    $region18: #{tpu_custom_call.1} parent=1 // pred_check
      _
    $region19: #{tpu_custom_call.1} parent=1 // pred_check_branch
      %40 = sbr.rel (0) target = $region21
    $region20: #{tpu_custom_call.1} parent=1 // pred_region
      _
    $region21: #{tpu_custom_call.1} parent=1 // pred_fallthru
      _
    // Predicated region
    $region22: #{tpu_custom_call.1} parent=1 // pred_check
      _
    $region23: #{tpu_custom_call.1} parent=1 // pred_check_branch
      %42 = sbr.rel (0) target = $region25
    $region24: #{tpu_custom_call.1} parent=1 // pred_region
      _
    $region25: #{tpu_custom_call.1} parent=1 // pred_fallthru
      _
    // Predicated region
    $region26: #{tpu_custom_call.1} parent=1 // pred_check
      _
    $region27: #{tpu_custom_call.1} parent=1 // pred_check_branch
      %44 = sbr.rel (0) target = $region29
    $region28: #{tpu_custom_call.1} parent=1 // pred_region
      _
    $region29: #{tpu_custom_call.1} parent=1 // pred_fallthru
      _
    // Predicated region
    $region30: #{tpu_custom_call.1} parent=1 // pred_check
      _
    $region31: #{tpu_custom_call.1} parent=1 // pred_check_branch
      %46 = sbr.rel (0) target = $region33
    $region32: #{tpu_custom_call.1} parent=1 // pred_region
      %47 = dma.done [#allocation5], 128
    $region33: #{tpu_custom_call.1} parent=1 // pred_fallthru
      _
    %p48 = scmp.eq.s32.totalorder 0, 0
    // Predicated region
    $region34: #{tpu_custom_call.1} parent=1 // pred_check
      %p49 = pneg %p48
    $region35: #{tpu_custom_call.1} parent=1 // pred_check_branch
      %51 = sbr.rel (%p49) target = $region37
    $region36: #{tpu_custom_call.1} parent=1 // pred_region
      %v52 = vld [vmem:[%s4] sm:$0x1]
      %v53 = vld [vmem:[%s5] sm:$0x1]
      %v54 = vmul.f32 %v52, 0.9
      %v55 = vld [vmem:[%s2] sm:$0x1]
      %v56 = vmul.f32 %v55, 0.1
      %v57 = vadd.f32 %v54, %v56
      %v58 = vld [vmem:[%s3] sm:$0x1]
      %v59 = vmul.f32 %v58, 0.12903225
      %v60 = vmul.f32 %v57, %v57
      %v61 = vmul.f32 %v60, 1.032258
      %v62 = vsub.f32 %v59, %v61
      %v63 = vmul.f32 %v53, 0.9
      %v64 = vmul.f32 %v62, 0.1
      %v65 = vadd.f32 %v63, %v64
      %s66 = sld [smem:[#allocation3]]
      %p67 = scmp.gt.s32.totalorder %s66, 0
      %s68 = scalar_select %p67, 1, 0
      %s69 = scvt.s32.f32 %s68
      %v70 = vstv %s69
      %v71 = vmul.f32 %v70, %v57
      %s72 = ssub.f32 1.0, %s69
      %v73 = vstv %s72
      %v74 = vmul.f32 %v73, %v52
      %v75 = vadd.f32 %v71, %v74
      %vm76 = vcmask 253952
      %77 = vst.msk [vmem:[#allocation8] sm:$0x1] %vm76, %v75
      %v78 = vmul.f32 %v70, %v65
      %v79 = vmul.f32 %v73, %v53
      %v80 = vadd.f32 %v78, %v79
      %81 = vst.msk [vmem:[#allocation10] sm:$0x1] %vm76, %v80
      %82 = vst.msk [vmem:[#allocation11] sm:$0x1] %vm76, 0.0
      %83 = vst.msk [vmem:[#allocation13] sm:$0x1] %vm76, 0.0
    $region37: #{tpu_custom_call.1} parent=1 // pred_fallthru
      _
    %v84 = vld [vmem:[#allocation4] sm:$0xff]
    %v85 = vld [vmem:[#allocation11] sm:$0x1]
    %vm86 = vcmask 261120
    %v87 = vsel %vm86, %v84, 0.0
    %v88 = vrot.slane %v87, 4
    %v89 = vadd.f32 %v87, %v88
    %v90 = vrot.slane %v89, 2
    %v91 = vadd.f32 %v89, %v90
    %v92 = vrot.slane %v91, 1
    %v93 = vadd.f32 %v91, %v92
    %v94 = vadd.f32 %v85, %v93
    %vm95 = vcmask 253952
    %96 = vst.msk [vmem:[#allocation11] sm:$0x1] %vm95, %v94
    %v97 = vld [vmem:[#allocation13] sm:$0x1]
    %v98 = vmul.f32 %v84, %v84
    %v99 = vsel %vm86, %v98, 0.0
    %v100 = vrot.slane %v99, 4
    %v101 = vadd.f32 %v99, %v100
    %v102 = vrot.slane %v101, 2
    %v103 = vadd.f32 %v101, %v102
    %v104 = vrot.slane %v103, 1
    %v105 = vadd.f32 %v103, %v104
    %v106 = vadd.f32 %v97, %v105
    %107 = vst.msk [vmem:[#allocation13] sm:$0x1] %vm95, %v106
    %v108 = vld [vmem:[#allocation10] sm:$0x1]
    %v109 = vadd.f32 %v108, 1e-05
    %v110 = vrsqrt.pop %v109
    %v111 = vld [vmem:[#allocation8] sm:$0x1]
    %v113 = vlaneseq
    %v114 = vshrl.u32 %v113, 7
    %v115 = vsub.s32 0, %v114
    %v116 = vrot.slane %v111, %v115
    %v118 = vsub.f32 %v84, %v116
    %v120 = vlaneseq
    %v121 = vshrl.u32 %v120, 7
    %v122 = vsub.s32 0, %v121
    %v123 = vrot.slane %v110, %v122
    %v125 = vmul.f32 %v118, %v123
    %v126 = vld [vmem:[%s6] sm:$0x1]
    %v128 = vlaneseq
    %v129 = vshrl.u32 %v128, 7
    %v130 = vsub.s32 0, %v129
    %v131 = vrot.slane %v126, %v130
    %v133 = vmul.f32 %v125, %v131
    %v134 = vld [vmem:[%s7] sm:$0x1]
    %v136 = vlaneseq
    %v137 = vshrl.u32 %v136, 7
    %v138 = vsub.s32 0, %v137
    %v139 = vrot.slane %v134, %v138
    %v141 = vadd.f32 %v133, %v139
    %142 = vst.msk [vmem:[#allocation7] sm:$0xff] %vm86, %v141
    // Predicated region
    $region38: #{tpu_custom_call.1} parent=1 // pred_check
      %p143 = pneg %p48
    $region39: #{tpu_custom_call.1} parent=1 // pred_check_branch
      %145 = sbr.rel (%p143) target = $region41
    $region40: #{tpu_custom_call.1} parent=1 // pred_region
      %v146 = vld [vmem:[#allocation11] sm:$0x1]
      %v147 = vmul.f32 %v146, 0.125
      %148 = vst.msk [vmem:[#allocation11] sm:$0x1] %vm95, %v147
    $region41: #{tpu_custom_call.1} parent=1 // pred_fallthru
      _
    // Predicated region
    $region42: #{tpu_custom_call.1} parent=1 // pred_check
      _
    $region43: #{tpu_custom_call.1} parent=1 // pred_check_branch
      %150 = sbr.rel (0) target = $region45
    $region44: #{tpu_custom_call.1} parent=1 // pred_region
      %s152 = ssub.s32 128, 128
      %153 = vsyncadd [#allocation6], %s152
      %s155 = sshll.u32 [#allocation7], 4
      %s156 = int_to_ptr.vmem [resolvable:$true] %s155
      %158 = dma.vmem_to_hbm [thread:$0]  %s156, 128, %s8, [#allocation6]
    $region45: #{tpu_custom_call.1} parent=1 // pred_fallthru
      _
    // Predicated region
    $region46: #{tpu_custom_call.1} parent=1 // pred_check
      _
    $region47: #{tpu_custom_call.1} parent=1 // pred_check_branch
      %160 = sbr.rel (0) target = $region49
    $region48: #{tpu_custom_call.1} parent=1 // pred_region
      %s162 = ssub.s32 16, 16
      %163 = vsyncadd [#allocation9], %s162
      %s165 = sshll.u32 [#allocation8], 4
      %s166 = int_to_ptr.vmem [resolvable:$true] %s165
      %168 = dma.vmem_to_hbm [thread:$0]  %s166, 16, %s9, [#allocation9]
    $region49: #{tpu_custom_call.1} parent=1 // pred_fallthru
      _
    // Predicated region
    $region50: #{tpu_custom_call.1} parent=1 // pred_check
      _
    $region51: #{tpu_custom_call.1} parent=1 // pred_check_branch
      %170 = sbr.rel (0) target = $region53
    $region52: #{tpu_custom_call.1} parent=1 // pred_region
      %s172 = ssub.s32 16, 16
      %173 = vsyncadd [#allocation9], %s172
      %s175 = sshll.u32 [#allocation10], 4
      %s176 = int_to_ptr.vmem [resolvable:$true] %s175
      %178 = dma.vmem_to_hbm [thread:$0]  %s176, 16, %s10, [#allocation9]
    $region53: #{tpu_custom_call.1} parent=1 // pred_fallthru
      _
    // Predicated region
    $region54: #{tpu_custom_call.1} parent=1 // pred_check
      _
    $region55: #{tpu_custom_call.1} parent=1 // pred_check_branch
      %180 = sbr.rel (0) target = $region57
    $region56: #{tpu_custom_call.1} parent=1 // pred_region
      %s182 = ssub.s32 16, 16
      %183 = vsyncadd [#allocation12], %s182
      %s185 = sshll.u32 [#allocation11], 4
      %s186 = int_to_ptr.vmem [resolvable:$true] %s185
      %188 = dma.vmem_to_hbm [thread:$0]  %s186, 16, %s11, [#allocation12]
    $region57: #{tpu_custom_call.1} parent=1 // pred_fallthru
      _
    // Predicated region
    $region58: #{tpu_custom_call.1} parent=1 // pred_check
      _
    $region59: #{tpu_custom_call.1} parent=1 // pred_check_branch
      %190 = sbr.rel (0) target = $region61
    $region60: #{tpu_custom_call.1} parent=1 // pred_region
      %s192 = ssub.s32 16, 16
      %193 = vsyncadd [#allocation12], %s192
      %s195 = sshll.u32 [#allocation13], 4
      %s196 = int_to_ptr.vmem [resolvable:$true] %s195
      %198 = dma.vmem_to_hbm [thread:$0]  %s196, 16, %s12, [#allocation12]
    $region61: #{tpu_custom_call.1} parent=1 // pred_fallthru
      _
    // Predicated region
    $region62: #{tpu_custom_call.1} parent=1 // pred_check
      _
    $region63: #{tpu_custom_call.1} parent=1 // pred_check_branch
      %200 = sbr.rel (0) target = $region65
    $region64: #{tpu_custom_call.1} parent=1 // pred_region
      %201 = dma.done [#allocation6], 128
    $region65: #{tpu_custom_call.1} parent=1 // pred_fallthru
      _
    // Predicated region
    $region66: #{tpu_custom_call.1} parent=1 // pred_check
      _
    $region67: #{tpu_custom_call.1} parent=1 // pred_check_branch
      %203 = sbr.rel (0) target = $region69
    $region68: #{tpu_custom_call.1} parent=1 // pred_region
      %204 = dma.done [#allocation9], 16
    $region69: #{tpu_custom_call.1} parent=1 // pred_fallthru
      _
    // Predicated region
    $region70: #{tpu_custom_call.1} parent=1 // pred_check
      _
    $region71: #{tpu_custom_call.1} parent=1 // pred_check_branch
      %206 = sbr.rel (0) target = $region73
    $region72: #{tpu_custom_call.1} parent=1 // pred_region
      %207 = dma.done [#allocation9], 16
    $region73: #{tpu_custom_call.1} parent=1 // pred_fallthru
      _
    // Predicated region
    $region74: #{tpu_custom_call.1} parent=1 // pred_check
      _
    $region75: #{tpu_custom_call.1} parent=1 // pred_check_branch
      %209 = sbr.rel (0) target = $region77
    $region76: #{tpu_custom_call.1} parent=1 // pred_region
      %210 = dma.done [#allocation12], 16
    $region77: #{tpu_custom_call.1} parent=1 // pred_fallthru
      _
    // Predicated region
    $region78: #{tpu_custom_call.1} parent=1 // pred_check
      _
    $region79: #{tpu_custom_call.1} parent=1 // pred_check_branch
      %212 = sbr.rel (0) target = $region81
    $region80: #{tpu_custom_call.1} parent=1 // pred_region
      %213 = dma.done [#allocation12], 16
    $region81: #{tpu_custom_call.1} parent=1 // pred_fallthru
      _
    %214 = vsyncpa [#allocation5], 1
    %215 = vsyncpa [#allocation6], 1
    %216 = vsyncpa [#allocation9], 1
    %217 = vsyncpa [#allocation12], 1

</llo_original>
